<compile_context>
chip_gen: v7x
topology: tpu7x:2x2x1
jax: 0.10.0
libtpu: 0.0.40
codegen_flags: <defaults>
</compile_context>

<pallas_src>
import jax
import jax.numpy as jnp
from jax.experimental import pallas as pl
from jax.experimental.pallas import tpu as pltpu


def _argmax0_first(a, row_count):
    """First-occurrence argmax along axis 0 (matches torch.argmax); (1, cols) int32."""
    idx = jax.lax.broadcasted_iota(jnp.int32, a.shape, 0)
    mx = jnp.max(a, axis=0, keepdims=True)
    cand = jnp.where(a == mx, idx, jnp.int32(row_count))
    return jnp.min(cand, axis=0, keepdims=True)


def my_cat_kernel(x1_ref, x2_ref, out_ref):
    x1 = x1_ref[...]                     # (R, C1)
    x2 = x2_ref[...]                     # (R, C2)
    R = x1_ref.shape[0]
    dt = out_ref.dtype

    # v4 = sigmoid([x1 | x2 | x2 | x1]); argmax over dim 0 is column-wise and
    # sigmoid is strictly monotone, so it reduces to per-block argmaxes of the
    # raw inputs (no transcendentals, no in-kernel 2C-wide concatenate).
    a1 = _argmax0_first(x1, R).astype(dt)   # (1, C1)  argmax cols of x1
    a2 = _argmax0_first(x2, R).astype(dt)   # (1, C2)  argmax cols of x2

    # Assemble n = cat([v1, m], dim=0) fully in registers, then one dense store
    # of n[:, 2:] — collapses the previous six masked sub-block stores into a
    # single vst on the output tile.
    v1 = jnp.concatenate([x1, x2], axis=1)        # (R, C)   = cat([x1, x2], dim=1)
    m0 = jnp.concatenate([a1, a2], axis=1)        # (1, C)   argmax row for v1 cols
    m1 = jnp.concatenate([a2, a1], axis=1)        # (1, C)   argmax row for v2 cols
    n = jnp.concatenate([v1, m0, m1], axis=0)     # (R+2, C)

    out_ref[...] = n[:, 2:]                       # (R+2, C-2), single store


def my_cat(x1, x2):
    R, C1 = x1.shape
    R2, C2 = x2.shape
    assert R == R2, "dim 0 must match for cat(dim=1)"
    assert C1 > 2 and C2 > 2, "need C1, C2 > 2 (avoids zero-width slices)"
    C = C1 + C2
    out_dtype = jnp.result_type(x1.dtype, x2.dtype)   # torch.cat promotion
    return pl.pallas_call(
        my_cat_kernel,
        out_shape=jax.ShapeDtypeStruct((R + 2, C - 2), out_dtype),
        grid=(1,),
        in_specs=[pl.BlockSpec((R, C1), lambda i: (0, 0)),
                  pl.BlockSpec((R, C2), lambda i: (0, 0))],
        out_specs=pl.BlockSpec((R + 2, C - 2), lambda i: (0, 0)),
        compiler_params=pltpu.CompilerParams(
            dimension_semantics=("arbitrary",)),
    )(x1, x2)


def my_cat_reference(x1, x2):
    """Pure-JAX reference matching the torch forward (keeps the sigmoid)."""
    v1 = jnp.concatenate([x1, x2], axis=1)
    v2 = jnp.concatenate([x2, x1], axis=1)
    v4 = jax.nn.sigmoid(jnp.concatenate([v1, v2], axis=1))
    m = jnp.argmax(v4, axis=0).reshape(2, -1).astype(v1.dtype)
    n = jnp.concatenate([v1, m], axis=0)
    return n.T[2:].T


if __name__ == "__main__":
    key = jax.random.PRNGKey(0)
    k1, k2 = jax.random.split(key)
    x1 = jax.random.normal(k1, (4, 5), dtype=jnp.float32)   # mirrors torch (4, 5)
    x2 = jax.random.normal(k2, (4, 3), dtype=jnp.float32)   # mirrors torch (4, 3)

    out = my_cat(x1, x2)
    jax.block_until_ready(out)

    ref = my_cat_reference(x1, x2)
    assert out.shape == ref.shape == (6, 6), (out.shape, ref.shape)
    assert out.dtype == ref.dtype, (out.dtype, ref.dtype)
    assert jnp.allclose(out, ref, atol=1e-6, rtol=1e-6)
    print("KERNEL_OK")
</pallas_src>

<mosaic_0001>
module attributes {stable_mosaic.version = 11 : i64} {
  func.func @my_cat_kernel(%arg0: i32, %arg1: memref<4x5xf32, #tpu.memory_space<vmem>>, %arg2: memref<4x3xf32, #tpu.memory_space<vmem>>, %arg3: memref<6x6xf32, #tpu.memory_space<vmem>>) attributes {dimension_semantics = [#tpu.dimension_semantics<arbitrary>], iteration_bounds = array<i64: 1>, scalar_prefetch = 0 : i64, scratch_operands = 0 : i64, tpu.core_type = #tpu.core_type<tc>, window_params = [{pipeline_mode = #tpu.pipeline_mode<synchronous>, transform_indices = @transform_0, window_bounds = array<i64: 4, 5>}, {pipeline_mode = #tpu.pipeline_mode<synchronous>, transform_indices = @transform_1, window_bounds = array<i64: 4, 3>}, {pipeline_mode = #tpu.pipeline_mode<synchronous>, transform_indices = @transform_2, window_bounds = array<i64: 6, 6>}]} {
    %c0 = arith.constant 0 : index
    %c0_0 = arith.constant 0 : index
    %0 = vector.load %arg1[%c0, %c0_0] : memref<4x5xf32, #tpu.memory_space<vmem>>, vector<4x5xf32>
    %c0_1 = arith.constant 0 : index
    %c0_2 = arith.constant 0 : index
    %1 = vector.load %arg2[%c0_1, %c0_2] : memref<4x3xf32, #tpu.memory_space<vmem>>, vector<4x3xf32>
    %2 = tpu.iota {dimensions = array<i32: 0>} : vector<4x5xi32>
    %cst = arith.constant dense<0xFF800000> : vector<5xf32>
    %3 = vector.multi_reduction <maximumf>, %0, %cst [0] : vector<4x5xf32> to vector<5xf32>
    %4 = vector.shape_cast %3 : vector<5xf32> to vector<1x5xf32>
    %5 = vector.broadcast %4 : vector<1x5xf32> to vector<4x5xf32>
    %6 = arith.cmpf oeq, %0, %5 : vector<4x5xf32>
    %c4_i32 = arith.constant 4 : i32
    %7 = vector.broadcast %c4_i32 : i32 to vector<4x5xi32>
    %8 = arith.select %6, %2, %7 : vector<4x5xi1>, vector<4x5xi32>
    %cst_3 = arith.constant dense<2147483647> : vector<5xi32>
    %9 = vector.multi_reduction <minsi>, %8, %cst_3 [0] : vector<4x5xi32> to vector<5xi32>
    %10 = vector.shape_cast %9 : vector<5xi32> to vector<1x5xi32>
    %11 = arith.sitofp %10 : vector<1x5xi32> to vector<1x5xf32>
    %12 = tpu.iota {dimensions = array<i32: 0>} : vector<4x3xi32>
    %cst_4 = arith.constant dense<0xFF800000> : vector<3xf32>
    %13 = vector.multi_reduction <maximumf>, %1, %cst_4 [0] : vector<4x3xf32> to vector<3xf32>
    %14 = vector.shape_cast %13 : vector<3xf32> to vector<1x3xf32>
    %15 = vector.broadcast %14 : vector<1x3xf32> to vector<4x3xf32>
    %16 = arith.cmpf oeq, %1, %15 : vector<4x3xf32>
    %c4_i32_5 = arith.constant 4 : i32
    %17 = vector.broadcast %c4_i32_5 : i32 to vector<4x3xi32>
    %18 = arith.select %16, %12, %17 : vector<4x3xi1>, vector<4x3xi32>
    %cst_6 = arith.constant dense<2147483647> : vector<3xi32>
    %19 = vector.multi_reduction <minsi>, %18, %cst_6 [0] : vector<4x3xi32> to vector<3xi32>
    %20 = vector.shape_cast %19 : vector<3xi32> to vector<1x3xi32>
    %21 = arith.sitofp %20 : vector<1x3xi32> to vector<1x3xf32>
    %22 = tpu.concatenate %0, %1 in 1 : vector<4x5xf32>, vector<4x3xf32> -> vector<4x8xf32>
    %23 = tpu.concatenate %11, %21 in 1 : vector<1x5xf32>, vector<1x3xf32> -> vector<1x8xf32>
    %24 = tpu.concatenate %21, %11 in 1 : vector<1x3xf32>, vector<1x5xf32> -> vector<1x8xf32>
    %25 = tpu.concatenate %22, %23, %24 in 0 : vector<4x8xf32>, vector<1x8xf32>, vector<1x8xf32> -> vector<6x8xf32>
    %26 = vector.extract_strided_slice %25 {offsets = [0, 2], sizes = [6, 6], strides = [1, 1]} : vector<6x8xf32> to vector<6x6xf32>
    %c0_7 = arith.constant 0 : index
    %c0_8 = arith.constant 0 : index
    %27 = vector.load %arg3[%c0_7, %c0_8] : memref<6x6xf32, #tpu.memory_space<vmem>>, vector<6x6xf32>
    tpu.vector_store %arg3[%c0_7, %c0_8], %26 {strides = array<i32>} : memref<6x6xf32, #tpu.memory_space<vmem>>, vector<6x6xf32>,
    return
  }
  func.func @transform_0(%arg0: i32) -> (i32, i32) {
    %c0_i32 = arith.constant 0 : i32
    %c0_i32_0 = arith.constant 0 : i32
    %c0_i32_1 = arith.constant 0 : i32
    return %c0_i32, %c0_i32_0 : i32, i32
  }
  func.func @transform_1(%arg0: i32) -> (i32, i32) {
    %c0_i32 = arith.constant 0 : i32
    %c0_i32_0 = arith.constant 0 : i32
    %c0_i32_1 = arith.constant 0 : i32
    return %c0_i32, %c0_i32_0 : i32, i32
  }
  func.func @transform_2(%arg0: i32) -> (i32, i32) {
    %c0_i32 = arith.constant 0 : i32
    %c0_i32_0 = arith.constant 0 : i32
    %c0_i32_1 = arith.constant 0 : i32
    return %c0_i32, %c0_i32_0 : i32, i32
  }
}

</mosaic_0001>

<llo_original>
// kernel: tpu_custom_call.1
$region0: #{tpu_custom_call.1}
  #allocation0 [shape = 'u32[]', space=smem, size = 0x4, offset = 0x4, fixed_abs, tag = 'smem constant byte address 0x4 - core index']
  #allocation1 [shape = 'u32[144,128]{1,0:T(1,128)}', space=vmem, size = 0x12000, scoped, tag = 'internal scratch']
  %s0 = inlined_call_operand.hbm [shape: f32[4,5], index: 0, kind: input, shape index: {}]
  %s1 = inlined_call_operand.hbm [shape: f32[4,3], index: 1, kind: input, shape index: {}]
  %s2 = inlined_call_operand.hbm [shape: f32[6,6], index: 2, kind: output, shape index: {}]
  %s3 = sld [smem:[#allocation0]]
  $region26: #{tpu_custom_call.1} parent=0
    _
  %s5 = ssub.s32 1, %s3
  %s6 = scalar_select 0, %s5, %s3
  $region1: #{tpu_custom_call.1} parent=0
    #allocation2 [shape = 'u8[2048]{0}', space=vmem, size = 0x800, scoped, tag = 'input window, operand 0, single buffered']
    #allocation3 [shape = 's32[1]{0}', space=sflag, size = 0x4, scoped, tag = 'scoped memory for tpu_custom_call.1']
    #allocation4 [shape = 's32[1]{0}', space=sflag, size = 0x4, scoped, tag = 'scoped memory for tpu_custom_call.1']
    #allocation5 [shape = 'u8[2048]{0}', space=vmem, size = 0x800, scoped, tag = 'input window, operand 1, single buffered']
    #allocation6 [shape = 's32[1]{0}', space=sflag, size = 0x4, scoped, tag = 'scoped memory for tpu_custom_call.1']
    #allocation7 [shape = 'u8[4096]{0}', space=vmem, size = 0x1000, scoped, tag = 'output window, operand 0, single buffered']
    %7 = vsyncpa [#allocation3], 0
    %8 = vsyncpa [#allocation6], 0
    %9 = vsyncpa [#allocation4], 0
    // Predicated region
    $region2: #{tpu_custom_call.1} parent=1 // pred_check
      _
    $region3: #{tpu_custom_call.1} parent=1 // pred_check_branch
      %11 = sbr.rel (0) target = $region5
    $region4: #{tpu_custom_call.1} parent=1 // pred_region
      %s13 = ssub.s32 64, 64
      %14 = vsyncadd [#allocation3], %s13
      %s16 = sshll.u32 [#allocation2], 4
      %s17 = int_to_ptr.vmem [resolvable:$true] %s16
      %19 = dma.hbm_to_vmem [thread:$0]  %s0, 64, %s17, [#allocation3]
    $region5: #{tpu_custom_call.1} parent=1 // pred_fallthru
      _
    // Predicated region
    $region6: #{tpu_custom_call.1} parent=1 // pred_check
      _
    $region7: #{tpu_custom_call.1} parent=1 // pred_check_branch
      %21 = sbr.rel (0) target = $region9
    $region8: #{tpu_custom_call.1} parent=1 // pred_region
      %s23 = ssub.s32 64, 64
      %24 = vsyncadd [#allocation6], %s23
      %s26 = sshll.u32 [#allocation5], 4
      %s27 = int_to_ptr.vmem [resolvable:$true] %s26
      %29 = dma.hbm_to_vmem [thread:$0]  %s1, 64, %s27, [#allocation6]
    $region9: #{tpu_custom_call.1} parent=1 // pred_fallthru
      _
    // Predicated region
    $region10: #{tpu_custom_call.1} parent=1 // pred_check
      _
    $region11: #{tpu_custom_call.1} parent=1 // pred_check_branch
      %31 = sbr.rel (0) target = $region13
    $region12: #{tpu_custom_call.1} parent=1 // pred_region
      %32 = dma.done [#allocation3], 64
    $region13: #{tpu_custom_call.1} parent=1 // pred_fallthru
      _
    // Predicated region
    $region14: #{tpu_custom_call.1} parent=1 // pred_check
      _
    $region15: #{tpu_custom_call.1} parent=1 // pred_check_branch
      %34 = sbr.rel (0) target = $region17
    $region16: #{tpu_custom_call.1} parent=1 // pred_region
      %35 = dma.done [#allocation6], 64
    $region17: #{tpu_custom_call.1} parent=1 // pred_fallthru
      _
    %v36 = vld [vmem:[#allocation2] sm:$0xf]
    %v37 = vld [vmem:[#allocation5] sm:$0xf]
    %v38 = vlaneseq
    %v39 = vshrl.u32 %v38, 7
    %vm40 = vcmask 35840
    %v41 = vsel %vm40, %v36, -inf
    %v42 = vrot.slane %v41, 4
    %v43 = vmax.f32 %v41, %v42
    %v44 = vrot.slane %v43, 2
    %v45 = vmax.f32 %v43, %v44
    %v46 = vrot.slane %v45, 1
    %v47 = vmax.f32 %v45, %v46
    %vm48 = vcmp.eq.f32.partialorder %v36, %v47
    %v49 = vsel %vm48, %v39, 4
    %v50 = vsel %vm40, %v49, 2147483647
    %v51 = vrot.slane %v50, 4
    %vm52 = vcmp.lt.s32.totalorder %v50, %v51
    %v53 = vsel %vm52, %v50, %v51
    %v54 = vrot.slane %v53, 2
    %vm55 = vcmp.lt.s32.totalorder %v53, %v54
    %v56 = vsel %vm55, %v53, %v54
    %v57 = vrot.slane %v56, 1
    %vm58 = vcmp.lt.s32.totalorder %v56, %v57
    %v59 = vsel %vm58, %v56, %v57
    %v60 = vcvt.s32.f32 %v59
    %vm61 = vcmask 19456
    %v62 = vsel %vm61, %v37, -inf
    %v63 = vrot.slane %v62, 4
    %v64 = vmax.f32 %v62, %v63
    %v65 = vrot.slane %v64, 2
    %v66 = vmax.f32 %v64, %v65
    %v67 = vrot.slane %v66, 1
    %v68 = vmax.f32 %v66, %v67
    %vm69 = vcmp.eq.f32.partialorder %v37, %v68
    %v70 = vsel %vm69, %v39, 4
    %v71 = vsel %vm61, %v70, 2147483647
    %v72 = vrot.slane %v71, 4
    %vm73 = vcmp.lt.s32.totalorder %v71, %v72
    %v74 = vsel %vm73, %v71, %v72
    %v75 = vrot.slane %v74, 2
    %vm76 = vcmp.lt.s32.totalorder %v74, %v75
    %v77 = vsel %vm76, %v74, %v75
    %v78 = vrot.slane %v77, 1
    %vm79 = vcmp.lt.s32.totalorder %v77, %v78
    %v80 = vsel %vm79, %v77, %v78
    %v81 = vcvt.s32.f32 %v80
    %83 = vrot.lane.b32.xlu0 %v37, 5
    %v84 = vpop.permute.xlu0 %83
    %vm86 = vcmask 39936
    %v87 = vsel %vm86, %v36, %v84
    %89 = vrot.lane.b32.xlu0 %v81, 5
    %v90 = vpop.permute.xlu0 %89
    %v92 = vsel %vm86, %v60, %v90
    %94 = vrot.lane.b32.xlu0 %v60, 3
    %v95 = vpop.permute.xlu0 %94
    %vm97 = vcmask 23552
    %v98 = vsel %vm97, %v81, %v95
    %v100 = vrot.slane %v92, 4
    %v103 = vrot.slane %v98, 3
    %vm105 = vcmask 1043456
    %v106 = vsel %vm105, %v87, %v100
    %vm107 = vcmask 1044480
    %v108 = vsel %vm107, %v106, %v103
    %110 = vrot.lane.b32.xlu0 %v108, 126
    %v111 = vpop.permute.xlu0 %110
    %vm113 = vcmask 46080
    %114 = vst.msk [vmem:[#allocation7] sm:$0x3f] %vm113, %v111
    // Predicated region
    $region18: #{tpu_custom_call.1} parent=1 // pred_check
      _
    $region19: #{tpu_custom_call.1} parent=1 // pred_check_branch
      %116 = sbr.rel (0) target = $region21
    $region20: #{tpu_custom_call.1} parent=1 // pred_region
      %s118 = ssub.s32 128, 128
      %119 = vsyncadd [#allocation4], %s118
      %s121 = sshll.u32 [#allocation7], 4
      %s122 = int_to_ptr.vmem [resolvable:$true] %s121
      %124 = dma.vmem_to_hbm [thread:$0]  %s122, 128, %s2, [#allocation4]
    $region21: #{tpu_custom_call.1} parent=1 // pred_fallthru
      _
    // Predicated region
    $region22: #{tpu_custom_call.1} parent=1 // pred_check
      _
    $region23: #{tpu_custom_call.1} parent=1 // pred_check_branch
      %126 = sbr.rel (0) target = $region25
    $region24: #{tpu_custom_call.1} parent=1 // pred_region
      %127 = dma.done [#allocation4], 128
    $region25: #{tpu_custom_call.1} parent=1 // pred_fallthru
      _
    %128 = vsyncpa [#allocation3], 1
    %129 = vsyncpa [#allocation6], 1
    %130 = vsyncpa [#allocation4], 1

</llo_original>
